<compile_context>
chip_gen: v5e
topology: v5e:2x2
jax: 0.10.0
libtpu: 0.0.40
codegen_flags: <defaults>
</compile_context>

<pallas_src>
import functools

import jax
import jax.numpy as jnp
from jax.experimental import pallas as pl
from jax.experimental.pallas import tpu as pltpu


# ----------------------------------------------------------------------------
# Kernel: full per-edge pipeline on a tile of `tile_e` edges (edges on lanes).
# ----------------------------------------------------------------------------
def mplp_edge_kernel(idx_ref, prop_ref, xT_ref, wslab_ref, vslab_ref, out_ref,
                     *, C, SP):
    CS = C + SP
    n_pad = xT_ref.shape[1]
    tile_e = idx_ref.shape[1]

    # --- in-kernel edge gather via one-hot MXU matmuls (lane-dense [C, tE]).
    node_iota = jax.lax.broadcasted_iota(jnp.int32, (n_pad, tile_e), 0)
    src = idx_ref[0:1, :]                                       # [1, tE] int32
    dst = idx_ref[1:2, :]
    onehot_i = (node_iota == src).astype(jnp.float32).astype(jnp.bfloat16)
    onehot_j = (node_iota == dst).astype(jnp.float32).astype(jnp.bfloat16)
    x_i = jnp.dot(xT_ref[...], onehot_i, preferred_element_type=jnp.float32)
    x_j = jnp.dot(xT_ref[...], onehot_j, preferred_element_type=jnp.float32)

    # --- hadamard feature combine (gather is exact; single rounding to bf16).
    xij = (x_i * x_j).astype(jnp.bfloat16)                      # [C, tE]

    # --- fused block-diagonal dot = feat layer 1 (BN folded) + struct branch.
    u = jnp.concatenate([xij, prop_ref[...]], axis=0)           # [CS, tE] bf16
    w_bd = wslab_ref[0:CS, :]                                    # [CS, CS] bf16
    b_bd = vslab_ref[0:CS, :]                                    # [CS, 1]  f32
    h_all = jnp.maximum(
        jnp.dot(w_bd, u, preferred_element_type=jnp.float32) + b_bd, 0.0)  # [CS, tE]

    # --- feat layer 2 (BN folded); weight zero-extended over struct rows,
    #     so no intermediate slicing of h_all is needed.
    w2e = wslab_ref[CS:CS + C, :]                                # [C, CS] bf16
    b2 = vslab_ref[CS:CS + C, :]                                 # [C, 1]  f32
    h2 = jnp.maximum(
        jnp.dot(w2e, h_all.astype(jnp.bfloat16),
                preferred_element_type=jnp.float32) + b2, 0.0)   # [C, tE]

    # --- classifier: VPU multiply + sublane reduce -> lane-dense [1, tE] logits.
    wc_feat = vslab_ref[CS + C:CS + 2 * C, :]                    # [C, 1]
    wc_struct = vslab_ref[CS + 2 * C:2 * CS + 2 * C, :]          # [CS, 1] (zero on feat rows)
    bc = vslab_ref[2 * CS + 2 * C:2 * CS + 2 * C + 1, :]         # [1, 1]
    logit = (jnp.sum(h2 * wc_feat, axis=0, keepdims=True)
             + jnp.sum(h_all * wc_struct, axis=0, keepdims=True)
             + bc)
    out_ref[...] = logit                                         # [1, tE]


# ----------------------------------------------------------------------------
# Parameter setup (PyTorch-style init, inference-mode BN stats) + BN folding.
# ----------------------------------------------------------------------------
def init_params(key, in_channels, struct_dim):
    ks = jax.random.split(key, 4)

    def linear(k, fan_in, fan_out):
        bound = 1.0 / jnp.sqrt(jnp.float32(fan_in))
        kw, kb = jax.random.split(k)
        w = jax.random.uniform(kw, (fan_in, fan_out), jnp.float32, -bound, bound)
        b = jax.random.uniform(kb, (fan_out,), jnp.float32, -bound, bound)
        return w, b

    def bn(dim):  # PyTorch defaults: gamma=1, beta=0, running_mean=0, running_var=1
        return dict(gamma=jnp.ones((dim,), jnp.float32),
                    beta=jnp.zeros((dim,), jnp.float32),
                    mean=jnp.zeros((dim,), jnp.float32),
                    var=jnp.ones((dim,), jnp.float32))

    C, S = in_channels, struct_dim
    w1, b1 = linear(ks[0], C, C)      # feat_encode layer 1
    w2, b2 = linear(ks[1], C, C)      # feat_encode layer 2
    ws, bs = linear(ks[2], S, S)      # struct_encode
    wc, bc = linear(ks[3], C + S, 1)  # classifier
    return dict(w1=w1, b1=b1, bn1=bn(C),
                w2=w2, b2=b2, bn2=bn(C),
                ws=ws, bs=bs, bns=bn(S),
                wc=wc, bc=bc)


def _fold_bn(w, b, bn, eps=1e-5):
    # y = BN(x @ w + b)  ->  x @ (w * scale) + (b * scale + shift)
    scale = bn["gamma"] / jnp.sqrt(bn["var"] + eps)
    shift = bn["beta"] - bn["mean"] * scale
    return w * scale[None, :], b * scale + shift


def prepare_kernel_params(params, in_channels, struct_dim=15, struct_pad=16):
    """Pack all weights/vectors into two slabs (one bf16, one f32)."""
    C, S, SP = in_channels, struct_dim, struct_pad
    CS = C + SP

    w1, b1 = _fold_bn(params["w1"], params["b1"], params["bn1"])
    w2, b2 = _fold_bn(params["w2"], params["b2"], params["bn2"])
    ws, bs = _fold_bn(params["ws"], params["bs"], params["bns"])
    wc, bc = params["wc"], params["bc"]

    # bf16 weight slab:
    #   rows 0:CS     -> block-diag(w1^T, ws^T)   (fused feat layer-1 + struct branch)
    #   rows CS:CS+C  -> [w2^T | 0]               (feat layer-2, zero over struct rows)
    # Struct pad channels (S..SP-1) have all-zero rows/cols -> exactly 0 through ReLU.
    wslab = jnp.zeros((CS + C, CS), jnp.float32)
    wslab = wslab.at[:C, :C].set(w1.T)
    wslab = wslab.at[C:C + S, C:C + S].set(ws.T)
    wslab = wslab.at[CS:CS + C, :C].set(w2.T)
    wslab = wslab.astype(jnp.bfloat16)

    # f32 vector slab (sublane-packed column):
    #   [0,CS)          b_bd = [b1 ; bs(padded)]
    #   [CS,CS+C)       b2
    #   [CS+C,CS+2C)    classifier weights for feat rows (applied to h2)
    #   [CS+2C,2CS+2C)  classifier weights applied to h_all (zero on feat rows)
    #   [2CS+2C]        classifier bias
    total = 2 * CS + 2 * C + 1
    v = jnp.zeros((total,), jnp.float32)
    v = v.at[:C].set(b1)
    v = v.at[C:C + S].set(bs)
    v = v.at[CS:CS + C].set(b2)
    v = v.at[CS + C:CS + 2 * C].set(wc[:C, 0])
    v = v.at[CS + 2 * C + C:CS + 2 * C + C + S].set(wc[C:, 0])
    v = v.at[2 * CS + 2 * C].set(bc[0])
    vslab = v.reshape(total, 1)

    return dict(wslab=wslab, vslab=vslab)


# ----------------------------------------------------------------------------
# Plain-JAX glue: structural-feature placeholder (stands in for NodeLabel).
# ----------------------------------------------------------------------------
def structural_features_placeholder(adj, edges, struct_dim):
    # TODO(synk): replace with NodeLabel('combine') hashing-sketch estimator once available.
    src, dst = edges[0], edges[1]
    deg = adj.sum(axis=1)
    a2 = adj @ adj
    cn = a2[src, dst]
    feats5 = jnp.stack([cn, deg[src], deg[dst], adj[src, dst], deg[src] * deg[dst]], axis=1)
    reps = struct_dim // feats5.shape[1]
    return jnp.tile(feats5, (1, reps)).astype(jnp.float32)          # [E, struct_dim]


# ----------------------------------------------------------------------------
# Tile selection & forward wrapper.
# ----------------------------------------------------------------------------
def choose_tile_e(E, min_steps=8, max_tile=4096):
    """Largest lane tile (multiple of 128, <= max_tile) that keeps ~min_steps grid
    steps, so both v7x TensorCores get >=4 steps and input DMA overlaps compute."""
    t = 128 * pl.cdiv(pl.cdiv(E, min_steps), 128)
    return int(max(128, min(max_tile, t)))


def mplp_forward(x, adj, edges, kparams, struct_dim=15, struct_pad=16, tile_e=None):
    E = edges.shape[1]
    N, C = x.shape
    SP = struct_pad
    CS = C + SP
    VTOT = 2 * CS + 2 * C + 1

    if tile_e is None:
        tile_e = choose_tile_e(E)
    assert tile_e % 128 == 0, "tile_e must be a multiple of 128 (lane width)"

    num_tiles = pl.cdiv(E, tile_e)
    E_pad = num_tiles * tile_e
    pad = E_pad - E

    # Whole node-feature table, transposed to [C, N_pad] bf16 (resident in VMEM).
    N_pad = 128 * pl.cdiv(N, 128)
    xT = jnp.zeros((C, N_pad), jnp.bfloat16).at[:, :N].set(x.T.astype(jnp.bfloat16))

    # Edge indices [2, E_pad] int32 (tail padded with node 0; logits sliced off below).
    idx = edges.astype(jnp.int32)

    # Structural features, padded 15 -> 16 channels, edges-on-lanes [SP, E_pad] bf16.
    prop = structural_features_placeholder(adj, edges, struct_dim)
    prop = jnp.pad(prop, ((0, 0), (0, SP - struct_dim))).T.astype(jnp.bfloat16)

    if pad:
        idx = jnp.pad(idx, ((0, 0), (0, pad)))
        prop = jnp.pad(prop, ((0, 0), (0, pad)))

    cost = pl.CostEstimate(
        flops=int(E_pad * (4 * C * N_pad + 2 * CS * CS + 2 * C * CS + 6 * CS)),
        transcendentals=0,
        bytes_accessed=int(E_pad * (2 * 4 + SP * 2 + 4)
                           + C * N_pad * 2 + (CS + C) * CS * 2 + VTOT * 4),
    )

    kernel = functools.partial(mplp_edge_kernel, C=C, SP=SP)

    out = pl.pallas_call(
        kernel,
        out_shape=jax.ShapeDtypeStruct((1, E_pad), jnp.float32),
        grid=(num_tiles,),
        in_specs=[
            pl.BlockSpec((2, tile_e), lambda i: (0, i)),        # edge indices
            pl.BlockSpec((SP, tile_e), lambda i: (0, i)),       # structural features
            pl.BlockSpec((C, N_pad), lambda i: (0, 0)),         # x^T (resident)
            pl.BlockSpec((CS + C, CS), lambda i: (0, 0)),       # packed bf16 weights
            pl.BlockSpec((VTOT, 1), lambda i: (0, 0)),          # packed f32 vectors
        ],
        out_specs=pl.BlockSpec((1, tile_e), lambda i: (0, i)),  # lane-dense logit row
        compiler_params=pltpu.CompilerParams(dimension_semantics=("parallel",)),
        cost_estimate=cost,
    )(idx, prop, xT, kparams["wslab"], kparams["vslab"])

    return out[:, :E].reshape(E, 1)                              # logits [E, 1]


if __name__ == "__main__":
    key = jax.random.PRNGKey(0)
    k_x, k_adj, k_edges, k_params = jax.random.split(key, 4)

    N = 64           # number of nodes
    C = 16           # in_channels
    E = 1024         # number of target edges -> 8 grid steps (>=4 per v7x core)
    STRUCT_DIM = 15  # prop_type='combine'

    x = jax.random.normal(k_x, (N, C), jnp.float32)
    a = (jax.random.uniform(k_adj, (N, N)) < 0.1).astype(jnp.float32)
    adj = jnp.maximum(a, a.T) * (1.0 - jnp.eye(N, dtype=jnp.float32))
    edges = jax.random.randint(k_edges, (2, E), 0, N)

    params = init_params(k_params, C, STRUCT_DIM)
    kparams = prepare_kernel_params(params, C, struct_dim=STRUCT_DIM)

    logits = mplp_forward(x, adj, edges, kparams, struct_dim=STRUCT_DIM)
    jax.block_until_ready(logits)
    assert logits.shape == (E, 1) and logits.dtype == jnp.float32
    print("KERNEL_OK")
</pallas_src>

<mosaic_0001>
module attributes {stable_mosaic.version = 11 : i64} {
  func.func @mplp_edge_kernel(%arg0: i32, %arg1: memref<2x128xi32, #tpu.memory_space<vmem>>, %arg2: memref<16x128xbf16, #tpu.memory_space<vmem>>, %arg3: memref<16x128xbf16, #tpu.memory_space<vmem>>, %arg4: memref<48x32xbf16, #tpu.memory_space<vmem>>, %arg5: memref<97x1xf32, #tpu.memory_space<vmem>>, %arg6: memref<1x128xf32, #tpu.memory_space<vmem>>) attributes {dimension_semantics = [#tpu.dimension_semantics<parallel>], iteration_bounds = array<i64: 8>, scalar_prefetch = 0 : i64, scratch_operands = 0 : i64, tpu.core_type = #tpu.core_type<tc>, window_params = [{transform_indices = @transform_0, window_bounds = array<i64: 2, 128>}, {transform_indices = @transform_1, window_bounds = array<i64: 16, 128>}, {pipeline_mode = #tpu.pipeline_mode<synchronous>, transform_indices = @transform_2, window_bounds = array<i64: 16, 128>}, {pipeline_mode = #tpu.pipeline_mode<synchronous>, transform_indices = @transform_3, window_bounds = array<i64: 48, 32>}, {pipeline_mode = #tpu.pipeline_mode<synchronous>, transform_indices = @transform_4, window_bounds = array<i64: 97, 1>}, {transform_indices = @transform_5, window_bounds = array<i64: 1, 128>}]} {
    %0 = tpu.iota {dimensions = array<i32: 0>} : vector<128x128xi32>
    %c0 = arith.constant 0 : index
    %c0_0 = arith.constant 0 : index
    %1 = vector.load %arg1[%c0, %c0_0] : memref<2x128xi32, #tpu.memory_space<vmem>>, vector<1x128xi32>
    %c1 = arith.constant 1 : index
    %c0_1 = arith.constant 0 : index
    %2 = vector.load %arg1[%c1, %c0_1] : memref<2x128xi32, #tpu.memory_space<vmem>>, vector<1x128xi32>
    %3 = vector.broadcast %1 : vector<1x128xi32> to vector<128x128xi32>
    %4 = arith.cmpi eq, %0, %3 : vector<128x128xi32>
    %5 = arith.extui %4 : vector<128x128xi1> to vector<128x128xi32>
    %6 = arith.sitofp %5 : vector<128x128xi32> to vector<128x128xf32>
    %7 = arith.truncf %6 : vector<128x128xf32> to vector<128x128xbf16>
    %8 = vector.broadcast %2 : vector<1x128xi32> to vector<128x128xi32>
    %9 = arith.cmpi eq, %0, %8 : vector<128x128xi32>
    %10 = arith.extui %9 : vector<128x128xi1> to vector<128x128xi32>
    %11 = arith.sitofp %10 : vector<128x128xi32> to vector<128x128xf32>
    %12 = arith.truncf %11 : vector<128x128xf32> to vector<128x128xbf16>
    %c0_2 = arith.constant 0 : index
    %c0_3 = arith.constant 0 : index
    %13 = vector.load %arg3[%c0_2, %c0_3] : memref<16x128xbf16, #tpu.memory_space<vmem>>, vector<16x128xbf16>
    %cst = arith.constant dense<0.000000e+00> : vector<16x128xf32>
    %14 = tpu.matmul %13, %7, %cst {dimension_numbers = #tpu.dot_dimension_numbers<[1], [0], [0], [1], [0, 0, 1, 1], [], []>} : vector<16x128xbf16>, vector<128x128xbf16>, vector<16x128xf32> -> vector<16x128xf32>
    %c0_4 = arith.constant 0 : index
    %c0_5 = arith.constant 0 : index
    %15 = vector.load %arg3[%c0_4, %c0_5] : memref<16x128xbf16, #tpu.memory_space<vmem>>, vector<16x128xbf16>
    %cst_6 = arith.constant dense<0.000000e+00> : vector<16x128xf32>
    %16 = tpu.matmul %15, %12, %cst_6 {dimension_numbers = #tpu.dot_dimension_numbers<[1], [0], [0], [1], [0, 0, 1, 1], [], []>} : vector<16x128xbf16>, vector<128x128xbf16>, vector<16x128xf32> -> vector<16x128xf32>
    %17 = arith.mulf %14, %16 : vector<16x128xf32>
    %18 = arith.truncf %17 : vector<16x128xf32> to vector<16x128xbf16>
    %c0_7 = arith.constant 0 : index
    %c0_8 = arith.constant 0 : index
    %19 = vector.load %arg2[%c0_7, %c0_8] : memref<16x128xbf16, #tpu.memory_space<vmem>>, vector<16x128xbf16>
    %20 = tpu.concatenate %18, %19 in 0 : vector<16x128xbf16>, vector<16x128xbf16> -> vector<32x128xbf16>
    %c0_9 = arith.constant 0 : index
    %c0_10 = arith.constant 0 : index
    %21 = vector.load %arg4[%c0_9, %c0_10] : memref<48x32xbf16, #tpu.memory_space<vmem>>, vector<32x32xbf16>
    %c0_11 = arith.constant 0 : index
    %c0_12 = arith.constant 0 : index
    %22 = vector.load %arg5[%c0_11, %c0_12] : memref<97x1xf32, #tpu.memory_space<vmem>>, vector<32x1xf32>
    %cst_13 = arith.constant dense<0.000000e+00> : vector<32x128xf32>
    %23 = tpu.matmul %21, %20, %cst_13 {dimension_numbers = #tpu.dot_dimension_numbers<[1], [0], [0], [1], [0, 0, 1, 1], [], []>} : vector<32x32xbf16>, vector<32x128xbf16>, vector<32x128xf32> -> vector<32x128xf32>
    %24 = vector.broadcast %22 : vector<32x1xf32> to vector<32x128xf32>
    %25 = arith.addf %23, %24 : vector<32x128xf32>
    %cst_14 = arith.constant 0.000000e+00 : f32
    %26 = vector.broadcast %cst_14 : f32 to vector<32x128xf32>
    %27 = arith.maximumf %25, %26 : vector<32x128xf32>
    %c32 = arith.constant 32 : index
    %c0_15 = arith.constant 0 : index
    %28 = vector.load %arg4[%c32, %c0_15] : memref<48x32xbf16, #tpu.memory_space<vmem>>, vector<16x32xbf16>
    %c32_16 = arith.constant 32 : index
    %c0_17 = arith.constant 0 : index
    %29 = vector.load %arg5[%c32_16, %c0_17] : memref<97x1xf32, #tpu.memory_space<vmem>>, vector<16x1xf32>
    %30 = arith.truncf %27 : vector<32x128xf32> to vector<32x128xbf16>
    %cst_18 = arith.constant dense<0.000000e+00> : vector<16x128xf32>
    %31 = tpu.matmul %28, %30, %cst_18 {dimension_numbers = #tpu.dot_dimension_numbers<[1], [0], [0], [1], [0, 0, 1, 1], [], []>} : vector<16x32xbf16>, vector<32x128xbf16>, vector<16x128xf32> -> vector<16x128xf32>
    %32 = vector.broadcast %29 : vector<16x1xf32> to vector<16x128xf32>
    %33 = arith.addf %31, %32 : vector<16x128xf32>
    %cst_19 = arith.constant 0.000000e+00 : f32
    %34 = vector.broadcast %cst_19 : f32 to vector<16x128xf32>
    %35 = arith.maximumf %33, %34 : vector<16x128xf32>
    %c48 = arith.constant 48 : index
    %c0_20 = arith.constant 0 : index
    %36 = vector.load %arg5[%c48, %c0_20] : memref<97x1xf32, #tpu.memory_space<vmem>>, vector<16x1xf32>
    %c64 = arith.constant 64 : index
    %c0_21 = arith.constant 0 : index
    %37 = vector.load %arg5[%c64, %c0_21] : memref<97x1xf32, #tpu.memory_space<vmem>>, vector<32x1xf32>
    %c96 = arith.constant 96 : index
    %c0_22 = arith.constant 0 : index
    %38 = vector.load %arg5[%c96, %c0_22] : memref<97x1xf32, #tpu.memory_space<vmem>>, vector<1x1xf32>
    %39 = vector.broadcast %36 : vector<16x1xf32> to vector<16x128xf32>
    %40 = arith.mulf %35, %39 : vector<16x128xf32>
    %cst_23 = arith.constant dense<0.000000e+00> : vector<128xf32>
    %41 = vector.multi_reduction <add>, %40, %cst_23 [0] : vector<16x128xf32> to vector<128xf32>
    %42 = vector.shape_cast %41 : vector<128xf32> to vector<1x128xf32>
    %43 = vector.broadcast %37 : vector<32x1xf32> to vector<32x128xf32>
    %44 = arith.mulf %27, %43 : vector<32x128xf32>
    %cst_24 = arith.constant dense<0.000000e+00> : vector<128xf32>
    %45 = vector.multi_reduction <add>, %44, %cst_24 [0] : vector<32x128xf32> to vector<128xf32>
    %46 = vector.shape_cast %45 : vector<128xf32> to vector<1x128xf32>
    %47 = arith.addf %42, %46 : vector<1x128xf32>
    %48 = vector.broadcast %38 : vector<1x1xf32> to vector<1x128xf32>
    %49 = arith.addf %47, %48 : vector<1x128xf32>
    %c0_25 = arith.constant 0 : index
    %c0_26 = arith.constant 0 : index
    %50 = vector.load %arg6[%c0_25, %c0_26] : memref<1x128xf32, #tpu.memory_space<vmem>>, vector<1x128xf32>
    tpu.vector_store %arg6[%c0_25, %c0_26], %49 {strides = array<i32>} : memref<1x128xf32, #tpu.memory_space<vmem>>, vector<1x128xf32>,
    return
  }
  func.func @transform_0(%arg0: i32) -> (i32, i32) {
    %c0_i32 = arith.constant 0 : i32
    %c0_i32_0 = arith.constant 0 : i32
    return %c0_i32, %arg0 : i32, i32
  }
  func.func @transform_1(%arg0: i32) -> (i32, i32) {
    %c0_i32 = arith.constant 0 : i32
    %c0_i32_0 = arith.constant 0 : i32
    return %c0_i32, %arg0 : i32, i32
  }
  func.func @transform_2(%arg0: i32) -> (i32, i32) {
    %c0_i32 = arith.constant 0 : i32
    %c0_i32_0 = arith.constant 0 : i32
    %c0_i32_1 = arith.constant 0 : i32
    return %c0_i32, %c0_i32_0 : i32, i32
  }
  func.func @transform_3(%arg0: i32) -> (i32, i32) {
    %c0_i32 = arith.constant 0 : i32
    %c0_i32_0 = arith.constant 0 : i32
    %c0_i32_1 = arith.constant 0 : i32
    return %c0_i32, %c0_i32_0 : i32, i32
  }
  func.func @transform_4(%arg0: i32) -> (i32, i32) {
    %c0_i32 = arith.constant 0 : i32
    %c0_i32_0 = arith.constant 0 : i32
    %c0_i32_1 = arith.constant 0 : i32
    return %c0_i32, %c0_i32_0 : i32, i32
  }
  func.func @transform_5(%arg0: i32) -> (i32, i32) {
    %c0_i32 = arith.constant 0 : i32
    %c0_i32_0 = arith.constant 0 : i32
    return %c0_i32, %arg0 : i32, i32
  }
}

</mosaic_0001>

<llo_original>
// kernel: tpu_custom_call.1
$region0: #{tpu_custom_call.1}
  #allocation0 [shape = 'u32[]', space=smem, size = 0x4, offset = 0x4, fixed_abs, tag = 'smem constant byte address 0x4 - core index']
  #allocation1 [shape = 'u32[72,128]{1,0:T(1,128)}', space=vmem, size = 0x9000, scoped, tag = 'internal scratch']
  %s0 = inlined_call_operand.vmem [shape: s32[2,1024], index: 0, kind: input, shape index: {}]
  %s1 = inlined_call_operand.vmem [shape: bf16[16,1024], index: 1, kind: input, shape index: {}]
  %s2 = inlined_call_operand.vmem [shape: bf16[16,128], index: 2, kind: input, shape index: {}]
  %s3 = inlined_call_operand.vmem [shape: bf16[48,32], index: 3, kind: input, shape index: {}]
  %s4 = inlined_call_operand.vmem [shape: f32[97,1], index: 4, kind: input, shape index: {}]
  %s5 = inlined_call_operand.hbm [shape: f32[1,1024], index: 5, kind: output, shape index: {}]
  %s6 = sld [smem:[#allocation0]]
  $region94: #{tpu_custom_call.1} parent=0
    _
  %s8 = ssub.s32 1, %s6
  %s9 = scalar_select 0, %s8, %s6
  $region1: #{tpu_custom_call.1} parent=0
    #allocation2 [shape = 'u8[8192]{0}', space=vmem, size = 0x2000, scoped, tag = 'input window, operand 1']
    #allocation3 [shape = 'u8[1024]{0}', space=vmem, size = 0x400, scoped, tag = 'output window, operand 0']
    #allocation4 [shape = 's32[2]{0}', space=sflag, size = 0x8, scoped, tag = 'scoped memory for tpu_custom_call.1']
    %10 = vsyncpa [#allocation4], 0
    %s11 = scalar_lea.sflag [#allocation4], 1
    %12 = vsyncpa %s11, 0
    loop: start=0, step=1, limit=10
    $region2: #{tpu_custom_call.1} parent=1 // loop_pre_header
      _
    $region3: #{tpu_custom_call.1} parent=1 // loop_header
      %s14 = sphi 0, %s18
      %p15 = scmp.ge.s32.totalorder %s14, 10
      %s24 = sphi 0, %s26
      %s27 = sphi 0, %s24
      %s28 = sphi 0, %s27
      %s44 = sphi 0, %s28
      %s50 = sphi 0, %s52
      %s53 = sphi 0, %s50
      %s54 = sphi 0, %s53
      %s70 = sphi 0, %s54
      %s74 = sphi 0, %s74
      %s76 = sphi 0, %s74
      %s77 = sphi 0, %s76
      %s91 = sphi 0, %s77
      %s95 = sphi 0, %s95
      %s97 = sphi 0, %s95
      %s98 = sphi 0, %s97
      %s112 = sphi 0, %s98
      %s116 = sphi 0, %s116
      %s118 = sphi 0, %s116
      %s119 = sphi 0, %s118
      %s133 = sphi 0, %s119
      %s139 = sphi 0, %s141
      %s142 = sphi 0, %s139
      %s143 = sphi 0, %s142
      %s159 = sphi 0, %s143
    $region4: #{tpu_custom_call.1} parent=1 // loop_header_branch
      %17 = sbr.rel (%p15) target = $region8
    $region5: #{tpu_custom_call.1} parent=1 // loop_body
      %s19 = ssub.s32 %s14, 1
      %s20 = ssub.s32 %s14, 2
      %s21 = sadd.s32 %s14, 1
      %s22 = ssub.s32 %s14, %s21
      %p23 = scmp.eq.s32.totalorder %s22, 0
      %s25 = sadd.s32 %s24, 1
      %s26 = scalar_select %p23, %s24, %s25
      %p29 = pneg %p23
      %p30 = scmp.eq.s32.totalorder %s14, 7
      %p31 = por %p29, %p30
      %p32 = scmp.ne.s32.totalorder %s24, %s27
      %p33 = scmp.eq.s32.totalorder %s14, 0
      %p34 = por %p32, %p33
      %p35 = scmp.ne.s32.totalorder %s24, %s27
      %p36 = scmp.eq.s32.totalorder %s19, 7
      %p37 = por %p35, %p36
      %p38 = scmp.ne.s32.totalorder %s27, %s28
      %p39 = scmp.eq.s32.totalorder %s19, 0
      %p40 = por %p38, %p39
      %p41 = scmp.ne.s32.totalorder %s27, %s28
      %p42 = scmp.eq.s32.totalorder %s20, 7
      %p43 = por %p41, %p42
      %p45 = scmp.ne.s32.totalorder %s28, %s44
      %p46 = scmp.eq.s32.totalorder %s20, 0
      %p47 = por %p45, %p46
      %s48 = ssub.s32 %s14, %s21
      %p49 = scmp.eq.s32.totalorder %s48, 0
      %s51 = sadd.s32 %s50, 1
      %s52 = scalar_select %p49, %s50, %s51
      %p55 = pneg %p49
      %p56 = scmp.eq.s32.totalorder %s14, 7
      %p57 = por %p55, %p56
      %p58 = scmp.ne.s32.totalorder %s50, %s53
      %p59 = scmp.eq.s32.totalorder %s14, 0
      %p60 = por %p58, %p59
      %p61 = scmp.ne.s32.totalorder %s50, %s53
      %p62 = scmp.eq.s32.totalorder %s19, 7
      %p63 = por %p61, %p62
      %p64 = scmp.ne.s32.totalorder %s53, %s54
      %p65 = scmp.eq.s32.totalorder %s19, 0
      %p66 = por %p64, %p65
      %p67 = scmp.ne.s32.totalorder %s53, %s54
      %p68 = scmp.eq.s32.totalorder %s20, 7
      %p69 = por %p67, %p68
      %p71 = scmp.ne.s32.totalorder %s54, %s70
      %p72 = scmp.eq.s32.totalorder %s20, 0
      %p73 = por %p71, %p72
      %s75 = sadd.s32 %s74, 1
      %p78 = scmp.eq.s32.totalorder %s14, 7
      %p79 = scmp.ne.s32.totalorder %s74, %s76
      %p80 = scmp.eq.s32.totalorder %s14, 0
      %p81 = por %p79, %p80
      %p82 = scmp.ne.s32.totalorder %s74, %s76
      %p83 = scmp.eq.s32.totalorder %s19, 7
      %p84 = por %p82, %p83
      %p85 = scmp.ne.s32.totalorder %s76, %s77
      %p86 = scmp.eq.s32.totalorder %s19, 0
      %p87 = por %p85, %p86
      %p88 = scmp.ne.s32.totalorder %s76, %s77
      %p89 = scmp.eq.s32.totalorder %s20, 7
      %p90 = por %p88, %p89
      %p92 = scmp.ne.s32.totalorder %s77, %s91
      %p93 = scmp.eq.s32.totalorder %s20, 0
      %p94 = por %p92, %p93
      %s96 = sadd.s32 %s95, 1
      %p99 = scmp.eq.s32.totalorder %s14, 7
      %p100 = scmp.ne.s32.totalorder %s95, %s97
      %p101 = scmp.eq.s32.totalorder %s14, 0
      %p102 = por %p100, %p101
      %p103 = scmp.ne.s32.totalorder %s95, %s97
      %p104 = scmp.eq.s32.totalorder %s19, 7
      %p105 = por %p103, %p104
      %p106 = scmp.ne.s32.totalorder %s97, %s98
      %p107 = scmp.eq.s32.totalorder %s19, 0
      %p108 = por %p106, %p107
      %p109 = scmp.ne.s32.totalorder %s97, %s98
      %p110 = scmp.eq.s32.totalorder %s20, 7
      %p111 = por %p109, %p110
      %p113 = scmp.ne.s32.totalorder %s98, %s112
      %p114 = scmp.eq.s32.totalorder %s20, 0
      %p115 = por %p113, %p114
      %s117 = sadd.s32 %s116, 1
      %p120 = scmp.eq.s32.totalorder %s14, 7
      %p121 = scmp.ne.s32.totalorder %s116, %s118
      %p122 = scmp.eq.s32.totalorder %s14, 0
      %p123 = por %p121, %p122
      %p124 = scmp.ne.s32.totalorder %s116, %s118
      %p125 = scmp.eq.s32.totalorder %s19, 7
      %p126 = por %p124, %p125
      %p127 = scmp.ne.s32.totalorder %s118, %s119
      %p128 = scmp.eq.s32.totalorder %s19, 0
      %p129 = por %p127, %p128
      %p130 = scmp.ne.s32.totalorder %s118, %s119
      %p131 = scmp.eq.s32.totalorder %s20, 7
      %p132 = por %p130, %p131
      %p134 = scmp.ne.s32.totalorder %s119, %s133
      %p135 = scmp.eq.s32.totalorder %s20, 0
      %p136 = por %p134, %p135
      %s137 = ssub.s32 %s14, %s21
      %p138 = scmp.eq.s32.totalorder %s137, 0
      %s140 = sadd.s32 %s139, 1
      %s141 = scalar_select %p138, %s139, %s140
      %p144 = pneg %p138
      %p145 = scmp.eq.s32.totalorder %s14, 7
      %p146 = por %p144, %p145
      %p147 = scmp.ne.s32.totalorder %s139, %s142
      %p148 = scmp.eq.s32.totalorder %s14, 0
      %p149 = por %p147, %p148
      %p150 = scmp.ne.s32.totalorder %s139, %s142
      %p151 = scmp.eq.s32.totalorder %s19, 7
      %p152 = por %p150, %p151
      %p153 = scmp.ne.s32.totalorder %s142, %s143
      %p154 = scmp.eq.s32.totalorder %s19, 0
      %p155 = por %p153, %p154
      %p156 = scmp.ne.s32.totalorder %s142, %s143
      %p157 = scmp.eq.s32.totalorder %s20, 7
      %p158 = por %p156, %p157
      %p160 = scmp.ne.s32.totalorder %s143, %s159
      %p161 = scmp.eq.s32.totalorder %s20, 0
      %p162 = por %p160, %p161
      %p163 = scmp.le.s32.totalorder 1, %s14
      %p164 = scmp.lt.s32.totalorder %s14, 9
      %p165 = pnand %p163, %p164
      %p166 = pneg %p165
      // Predicated region
      $region9: #{tpu_custom_call.1} parent=5 // pred_check
        _
      $region10: #{tpu_custom_call.1} parent=5 // pred_check_branch
        %168 = sbr.rel (%p165) target = $region12
      $region11: #{tpu_custom_call.1} parent=5 // pred_region
        %s169 = ssub.s32 %s14, 1
        // Predicated region
        $region13: #{tpu_custom_call.1} parent=11 // pred_check
          %p170 = pneg %p87
        $region14: #{tpu_custom_call.1} parent=11 // pred_check_branch
          %172 = sbr.rel (%p170) target = $region16
        $region15: #{tpu_custom_call.1} parent=11 // pred_region
          _
        $region16: #{tpu_custom_call.1} parent=11 // pred_fallthru
          _
        // Predicated region
        $region17: #{tpu_custom_call.1} parent=11 // pred_check
          %p173 = pneg %p108
        $region18: #{tpu_custom_call.1} parent=11 // pred_check_branch
          %175 = sbr.rel (%p173) target = $region20
        $region19: #{tpu_custom_call.1} parent=11 // pred_region
          _
        $region20: #{tpu_custom_call.1} parent=11 // pred_fallthru
          _
        // Predicated region
        $region21: #{tpu_custom_call.1} parent=11 // pred_check
          %p176 = pneg %p129
        $region22: #{tpu_custom_call.1} parent=11 // pred_check_branch
          %178 = sbr.rel (%p176) target = $region24
        $region23: #{tpu_custom_call.1} parent=11 // pred_region
          _
        $region24: #{tpu_custom_call.1} parent=11 // pred_fallthru
          _
      $region12: #{tpu_custom_call.1} parent=5 // pred_fallthru
        _
      %p179 = scmp.lt.s32.totalorder %s14, 8
      // Predicated region
      $region25: #{tpu_custom_call.1} parent=5 // pred_check
        %p180 = pneg %p179
      $region26: #{tpu_custom_call.1} parent=5 // pred_check_branch
        %182 = sbr.rel (%p180) target = $region28
      $region27: #{tpu_custom_call.1} parent=5 // pred_region
        // Predicated region
        $region29: #{tpu_custom_call.1} parent=27 // pred_check
          %p183 = pneg %p34
        $region30: #{tpu_custom_call.1} parent=27 // pred_check_branch
          %185 = sbr.rel (%p183) target = $region32
        $region31: #{tpu_custom_call.1} parent=27 // pred_region
          %p186 = scmp.lt.s32.totalorder %s14, 7
          %s187 = scalar_select %p186, %s14, 7
          %s188 = smul.addr %s187, 2
          %s189 = scalar_lea.vmem %s0, %s188
        $region32: #{tpu_custom_call.1} parent=27 // pred_fallthru
          _
        // Predicated region
        $region33: #{tpu_custom_call.1} parent=27 // pred_check
          %p190 = pneg %p60
        $region34: #{tpu_custom_call.1} parent=27 // pred_check_branch
          %192 = sbr.rel (%p190) target = $region36
        $region35: #{tpu_custom_call.1} parent=27 // pred_region
          %s193 = sand.u32 %s50, 1
          %s194 = sand.u32 %s50, 1
          %s195 = smul.addr %s194, 8
          %s196 = scalar_lea.vmem [#allocation2], %s195
          %s197 = smul.addr %s14, 4
          %s198 = scalar_lea.vmem %s1, %s197
          // Predicated region
          $region37: #{tpu_custom_call.1} parent=35 // pred_check
            _
          $region38: #{tpu_custom_call.1} parent=35 // pred_check_branch
            %200 = sbr.rel (0) target = $region40
          $region39: #{tpu_custom_call.1} parent=35 // pred_region
            // Predicated region
            $region41: #{tpu_custom_call.1} parent=39 // pred_check
              _
            $region42: #{tpu_custom_call.1} parent=39 // pred_check_branch
              %202 = sbr.rel target = $region44
            $region43: #{tpu_custom_call.1} parent=39 // pred_region
              // Predicated region
              $region56: #{tpu_custom_call.1} parent=43 // pred_check
                _
              $region57: #{tpu_custom_call.1} parent=43 // pred_check_branch
                %220 = sbr.rel (0) target = $region59
              $region58: #{tpu_custom_call.1} parent=43 // pred_region
                loop: start=0, step=1, limit=1
                $region60: #{tpu_custom_call.1} parent=58 // loop_pre_header
                  _
                $region61: #{tpu_custom_call.1} parent=58 // loop_header
                  %s222 = sphi 0, %s226
                  %p223 = scmp.ge.s32.totalorder %s222, 1
                  %s227 = sphi %s198, %s198
                  %s228 = sphi %s196, %s196
                $region62: #{tpu_custom_call.1} parent=58 // loop_header_branch
                  %225 = sbr.rel (%p223) target = $region66
                $region63: #{tpu_custom_call.1} parent=58 // loop_body
                  _
                $region64: #{tpu_custom_call.1} parent=58 // loop_footer
                  %s226 = sadd.s32 1, %s222
                $region65: #{tpu_custom_call.1} parent=58 // loop_footer_branch
                  %221 = sbr.rel target = $region61
                $region66: #{tpu_custom_call.1} parent=58 // loop_exit
                  _
                %s230 = ssub.s32 16, 1
                loop: start=0, step=1, limit=1
                $region67: #{tpu_custom_call.1} parent=58 // loop_pre_header
                  _
                $region68: #{tpu_custom_call.1} parent=58 // loop_header
                  %s232 = sphi 0, %s236
                  %p233 = scmp.ge.s32.totalorder %s232, 1
                  %s237 = sphi %s198, %s198
                  %s238 = sphi %s196, %s196
                $region69: #{tpu_custom_call.1} parent=58 // loop_header_branch
                  %235 = sbr.rel (%p233) target = $region73
                $region70: #{tpu_custom_call.1} parent=58 // loop_body
                  %v239 = vld [vmem:[%s237] sm:%s230]
                  %240 = vst [vmem:[%s238] sm:%s230] %v239
                  %v241 = vld [vmem:[%s237 + $0x20] sm:%s230]
                  %242 = vst [vmem:[%s238 + $0x4] sm:%s230] %v241
                $region71: #{tpu_custom_call.1} parent=58 // loop_footer
                  %s236 = sadd.s32 1, %s232
                $region72: #{tpu_custom_call.1} parent=58 // loop_footer_branch
                  %231 = sbr.rel target = $region68
                $region73: #{tpu_custom_call.1} parent=58 // loop_exit
                  _
              $region59: #{tpu_custom_call.1} parent=43 // pred_fallthru
                _
            $region44: #{tpu_custom_call.1} parent=39 // pred_fallthru
              _
            // Predicated region
            $region45: #{tpu_custom_call.1} parent=39 // pred_check
              _
            $region46: #{tpu_custom_call.1} parent=39 // pred_check_branch
              %204 = sbr.rel (0) target = $region48
            $region47: #{tpu_custom_call.1} parent=39 // pred_region
              %s206 = ssub.s32 16, 1
              loop: start=0, step=1, limit=1
              $region49: #{tpu_custom_call.1} parent=47 // loop_pre_header
                _
              $region50: #{tpu_custom_call.1} parent=47 // loop_header
                %s208 = sphi 0, %s212
                %p209 = scmp.ge.s32.totalorder %s208, 1
                %s213 = sphi %s198, %s198
                %s214 = sphi %s196, %s196
              $region51: #{tpu_custom_call.1} parent=47 // loop_header_branch
                %211 = sbr.rel (%p209) target = $region55
              $region52: #{tpu_custom_call.1} parent=47 // loop_body
                %v215 = vld [vmem:[%s213] sm:%s206]
                %216 = vst [vmem:[%s214] sm:%s206] %v215
                %v217 = vld [vmem:[%s213 + $0x20] sm:%s206]
                %218 = vst [vmem:[%s214 + $0x4] sm:%s206] %v217
              $region53: #{tpu_custom_call.1} parent=47 // loop_footer
                %s212 = sadd.s32 1, %s208
              $region54: #{tpu_custom_call.1} parent=47 // loop_footer_branch
                %207 = sbr.rel target = $region50
              $region55: #{tpu_custom_call.1} parent=47 // loop_exit
                _
            $region48: #{tpu_custom_call.1} parent=39 // pred_fallthru
              _
          $region40: #{tpu_custom_call.1} parent=35 // pred_fallthru
            _
          %243 = vnop
        $region36: #{tpu_custom_call.1} parent=27 // pred_fallthru
          _
      $region28: #{tpu_custom_call.1} parent=5 // pred_fallthru
        _
      %p244 = scmp.le.s32.totalorder 1, %s14
      %p245 = scmp.lt.s32.totalorder %s14, 9
      %p246 = pnand %p244, %p245
      %p247 = pneg %p246
      // Predicated region
      $region74: #{tpu_custom_call.1} parent=5 // pred_check
        _
      $region75: #{tpu_custom_call.1} parent=5 // pred_check_branch
        %249 = sbr.rel (%p246) target = $region77
      $region76: #{tpu_custom_call.1} parent=5 // pred_region
        %s250 = ssub.s32 %s14, 1
        %s251 = sand.u32 %s53, 1
        %s252 = sand.u32 %s53, 1
        %s253 = smul.addr %s252, 8
        %s254 = scalar_lea.vmem [#allocation2], %s253
        // Predicated region
        $region78: #{tpu_custom_call.1} parent=76 // pred_check
          %p255 = pneg %p66
        $region79: #{tpu_custom_call.1} parent=76 // pred_check_branch
          %257 = sbr.rel (%p255) target = $region81
        $region80: #{tpu_custom_call.1} parent=76 // pred_region
          _
        $region81: #{tpu_custom_call.1} parent=76 // pred_fallthru
          _
        %p258 = scmp.lt.s32.totalorder %s19, 7
        %s259 = scalar_select %p258, %s19, 7
        %s260 = smul.addr %s259, 2
        %s261 = scalar_lea.vmem %s0, %s260
        %p262 = pneg %p40
        %p263 = pneg %p37
        %s264 = sand.u32 %s53, 1
        %s265 = sand.u32 %s53, 1
        %s266 = smul.addr %s265, 8
        %s267 = scalar_lea.vmem [#allocation2], %s266
        %p268 = pneg %p66
        %p269 = pneg %p63
        %p270 = pneg %p87
        %p271 = pneg %p84
        %p272 = pneg %p108
        %p273 = pneg %p105
        %p274 = pneg %p129
        %p275 = pneg %p126
        %p276 = pneg %p155
        %p277 = pneg %p152
        %s278 = sand.u32 %s142, 1
        %s279 = scalar_lea.sflag [#allocation4], %s278
        %s280 = sand.u32 %s142, 1
        %s281 = scalar_lea.vmem [#allocation3], %s280
        %p282 = scmp.lt.s32.totalorder %s19, 7
        %s283 = scalar_select %p282, %s19, 7
        %s284 = smul.addr %s283, 2
        %s285 = scalar_lea.vmem %s0, %s284
        %v287 = vlaneseq
        %v288 = vshrl.u32 %v287, 7
        %v289 = vadd.s32 %v288, 8
        %v290 = vadd.s32 %v288, 16
        %v291 = vadd.s32 %v288, 24
        %v292 = vadd.s32 %v288, 32
        %v293 = vadd.s32 %v288, 40
        %v294 = vadd.s32 %v288, 48
        %v295 = vadd.s32 %v288, 56
        %v296 = vadd.s32 %v288, 64
        %v297 = vadd.s32 %v288, 72
        %v298 = vadd.s32 %v288, 80
        %v299 = vadd.s32 %v288, 88
        %v300 = vadd.s32 %v288, 96
        %v301 = vadd.s32 %v288, 104
        %v302 = vadd.s32 %v288, 112
        %v303 = vadd.s32 %v288, 120
        %v304 = vld [vmem:[%s285] sm:$0x1]
        %v305 = vld [vmem:[%s285 + $0x1] sm:$0x1]
        %v306 = vperm.slane %v304, 0
        %vm307 = vcmp.eq.s32.totalorder %v288, %v306
        %vm308 = vcmp.eq.s32.totalorder %v289, %v306
        %vm309 = vcmp.eq.s32.totalorder %v290, %v306
        %vm310 = vcmp.eq.s32.totalorder %v291, %v306
        %vm311 = vcmp.eq.s32.totalorder %v292, %v306
        %vm312 = vcmp.eq.s32.totalorder %v293, %v306
        %vm313 = vcmp.eq.s32.totalorder %v294, %v306
        %vm314 = vcmp.eq.s32.totalorder %v295, %v306
        %vm315 = vcmp.eq.s32.totalorder %v296, %v306
        %vm316 = vcmp.eq.s32.totalorder %v297, %v306
        %vm317 = vcmp.eq.s32.totalorder %v298, %v306
        %vm318 = vcmp.eq.s32.totalorder %v299, %v306
        %vm319 = vcmp.eq.s32.totalorder %v300, %v306
        %vm320 = vcmp.eq.s32.totalorder %v301, %v306
        %vm321 = vcmp.eq.s32.totalorder %v302, %v306
        %vm322 = vcmp.eq.s32.totalorder %v303, %v306
        %v323 = vsel %vm307, 1, 0
        %v324 = vsel %vm308, 1, 0
        %v325 = vsel %vm309, 1, 0
        %v326 = vsel %vm310, 1, 0
        %v327 = vsel %vm311, 1, 0
        %v328 = vsel %vm312, 1, 0
        %v329 = vsel %vm313, 1, 0
        %v330 = vsel %vm314, 1, 0
        %v331 = vsel %vm315, 1, 0
        %v332 = vsel %vm316, 1, 0
        %v333 = vsel %vm317, 1, 0
        %v334 = vsel %vm318, 1, 0
        %v335 = vsel %vm319, 1, 0
        %v336 = vsel %vm320, 1, 0
        %v337 = vsel %vm321, 1, 0
        %v338 = vsel %vm322, 1, 0
        %v339 = vcvt.s32.f32 %v323
        %v340 = vcvt.s32.f32 %v324
        %v341 = vcvt.s32.f32 %v325
        %v342 = vcvt.s32.f32 %v326
        %v343 = vcvt.s32.f32 %v327
        %v344 = vcvt.s32.f32 %v328
        %v345 = vcvt.s32.f32 %v329
        %v346 = vcvt.s32.f32 %v330
        %v347 = vcvt.s32.f32 %v331
        %v348 = vcvt.s32.f32 %v332
        %v349 = vcvt.s32.f32 %v333
        %v350 = vcvt.s32.f32 %v334
        %v351 = vcvt.s32.f32 %v335
        %v352 = vcvt.s32.f32 %v336
        %v353 = vcvt.s32.f32 %v337
        %v354 = vcvt.s32.f32 %v338
        %v355 = vpack.c.bf16 %v340, %v339
        %v356 = vpack.c.bf16 %v342, %v341
        %v357 = vpack.c.bf16 %v344, %v343
        %v358 = vpack.c.bf16 %v346, %v345
        %v359 = vpack.c.bf16 %v348, %v347
        %v360 = vpack.c.bf16 %v350, %v349
        %v361 = vpack.c.bf16 %v352, %v351
        %v362 = vpack.c.bf16 %v354, %v353
        %v363 = vperm.slane %v305, 0
        %vm364 = vcmp.eq.s32.totalorder %v288, %v363
        %vm365 = vcmp.eq.s32.totalorder %v289, %v363
        %vm366 = vcmp.eq.s32.totalorder %v290, %v363
        %vm367 = vcmp.eq.s32.totalorder %v291, %v363
        %vm368 = vcmp.eq.s32.totalorder %v292, %v363
        %vm369 = vcmp.eq.s32.totalorder %v293, %v363
        %vm370 = vcmp.eq.s32.totalorder %v294, %v363
        %vm371 = vcmp.eq.s32.totalorder %v295, %v363
        %vm372 = vcmp.eq.s32.totalorder %v296, %v363
        %vm373 = vcmp.eq.s32.totalorder %v297, %v363
        %vm374 = vcmp.eq.s32.totalorder %v298, %v363
        %vm375 = vcmp.eq.s32.totalorder %v299, %v363
        %vm376 = vcmp.eq.s32.totalorder %v300, %v363
        %vm377 = vcmp.eq.s32.totalorder %v301, %v363
        %vm378 = vcmp.eq.s32.totalorder %v302, %v363
        %vm379 = vcmp.eq.s32.totalorder %v303, %v363
        %v380 = vsel %vm364, 1, 0
        %v381 = vsel %vm365, 1, 0
        %v382 = vsel %vm366, 1, 0
        %v383 = vsel %vm367, 1, 0
        %v384 = vsel %vm368, 1, 0
        %v385 = vsel %vm369, 1, 0
        %v386 = vsel %vm370, 1, 0
        %v387 = vsel %vm371, 1, 0
        %v388 = vsel %vm372, 1, 0
        %v389 = vsel %vm373, 1, 0
        %v390 = vsel %vm374, 1, 0
        %v391 = vsel %vm375, 1, 0
        %v392 = vsel %vm376, 1, 0
        %v393 = vsel %vm377, 1, 0
        %v394 = vsel %vm378, 1, 0
        %v395 = vsel %vm379, 1, 0
        %v396 = vcvt.s32.f32 %v380
        %v397 = vcvt.s32.f32 %v381
        %v398 = vcvt.s32.f32 %v382
        %v399 = vcvt.s32.f32 %v383
        %v400 = vcvt.s32.f32 %v384
        %v401 = vcvt.s32.f32 %v385
        %v402 = vcvt.s32.f32 %v386
        %v403 = vcvt.s32.f32 %v387
        %v404 = vcvt.s32.f32 %v388
        %v405 = vcvt.s32.f32 %v389
        %v406 = vcvt.s32.f32 %v390
        %v407 = vcvt.s32.f32 %v391
        %v408 = vcvt.s32.f32 %v392
        %v409 = vcvt.s32.f32 %v393
        %v410 = vcvt.s32.f32 %v394
        %v411 = vcvt.s32.f32 %v395
        %v412 = vpack.c.bf16 %v397, %v396
        %v413 = vpack.c.bf16 %v399, %v398
        %v414 = vpack.c.bf16 %v401, %v400
        %v415 = vpack.c.bf16 %v403, %v402
        %v416 = vpack.c.bf16 %v405, %v404
        %v417 = vpack.c.bf16 %v407, %v406
        %v418 = vpack.c.bf16 %v409, %v408
        %v419 = vpack.c.bf16 %v411, %v410
        %v420 = vld [vmem:[%s2] sm:$0xf]
        %v421 = vld [vmem:[%s2 + $0x4] sm:$0xf]
        %v424 = vunpack.c.l.b16 %v420
        %v425 = vunpack.c.l.b16 %v421
        %v426 = vpack.c.b16 %v425, %v424
        %428 = vmatpush.bf16.msra.mxu0 %v362
        %429 = vmatpush.bf16.msra.mxu0 %v361
        %430 = vmatpush.bf16.msra.mxu0 %v360
        %431 = vmatpush.bf16.msra.mxu0 %v359
        %432 = vmatpush.bf16.msra.mxu0 %v358
        %433 = vmatpush.bf16.msra.mxu0 %v357
        %434 = vmatpush.bf16.msra.mxu0 %v356
        %435 = vmatpush.bf16.msra.mxu0 %v355
        %436 = vmatmul.bf16.gmra.mxu0 %v426
        %v437 = vpop.f32.mrf.mxu0
        %v438 = vadd.f32 0.0, %v437
        %v439 = vpop.f32.mrf.mxu0
        %v440 = vadd.f32 0.0, %v439
        %441 = vdwg.mxu0
        %442 = vmatpush.bf16.msra.mxu0 %v419
        %443 = vmatpush.bf16.msra.mxu0 %v418
        %444 = vmatpush.bf16.msra.mxu0 %v417
        %445 = vmatpush.bf16.msra.mxu0 %v416
        %446 = vmatpush.bf16.msra.mxu0 %v415
        %447 = vmatpush.bf16.msra.mxu0 %v414
        %448 = vmatpush.bf16.msra.mxu0 %v413
        %449 = vmatpush.bf16.msra.mxu0 %v412
        %450 = vmatmul.bf16.gmra.mxu0 %v426
        %v451 = vpop.f32.mrf.mxu0
        %v452 = vadd.f32 0.0, %v451
        %v453 = vpop.f32.mrf.mxu0
        %v454 = vadd.f32 0.0, %v453
        %455 = vdwg.mxu0
        %v456 = vmul.f32 %v438, %v452
        %v457 = vmul.f32 %v440, %v454
        %v458 = vpack.c.bf16 %v456, %v456
        %v459 = vpack.c.bf16 %v457, %v457
        %v460 = vld [vmem:[%s254] sm:$0xf]
        %v461 = vld [vmem:[%s254 + $0x4] sm:$0xf]
        %v464 = vunpack.c.l.b16 %v458
        %v465 = vunpack.c.l.b16 %v459
        %v466 = vpack.c.b16 %v465, %v464
        %v470 = vunpack.c.l.b16 %v460
        %v471 = vunpack.c.l.b16 %v461
        %v472 = vpack.c.b16 %v471, %v470
        %v474 = vld [vmem:[%s3] sm:$0xf]
        %v475 = vld [vmem:[%s3 + $0x4] sm:$0xf]
        %v476 = vld [vmem:[%s3 + $0x8] sm:$0xf]
        %v477 = vld [vmem:[%s3 + $0xc] sm:$0xf]
        %v478 = vld [vmem:[%s4] sm:$0xff]
        %v479 = vld [vmem:[%s4 + $0x8] sm:$0xff]
        %v480 = vld [vmem:[%s4 + $0x10] sm:$0xff]
        %v481 = vld [vmem:[%s4 + $0x18] sm:$0xff]
        %483 = vset.pattern.permute.xlu0 0
        %484 = vperm.xlu0 %483, %v478
        %v485 = vpop.permute.xlu0 %484
        %488 = vset.pattern.permute.xlu0 0
        %489 = vperm.xlu0 %488, %v479
        %v490 = vpop.permute.xlu0 %489
        %493 = vset.pattern.permute.xlu0 0
        %494 = vperm.xlu0 %493, %v480
        %v495 = vpop.permute.xlu0 %494
        %498 = vset.pattern.permute.xlu0 0
        %499 = vperm.xlu0 %498, %v481
        %v500 = vpop.permute.xlu0 %499
        %v506 = vunpack.c.l.b16 %v474
        %v507 = vunpack.c.l.b16 %v475
        %v508 = vunpack.c.l.b16 %v476
        %v509 = vunpack.c.l.b16 %v477
        %v510 = vpack.c.b16 %v507, %v506
        %v511 = vpack.c.b16 %v509, %v508
        %vm512 = vcmask 261120
        %v514 = vsel %vm512, %v510, 0
        %v517 = vsel %vm512, %v511, 0
        %519 = vmatpush.bf16.msra.mxu0 0
        %520 = vmatpush.bf16.msra.mxu0 0
        %521 = vmatpush.bf16.msra.mxu0 0
        %522 = vmatpush.bf16.msra.mxu0 0
        %523 = vmatpush.bf16.msra.mxu0 0
        %524 = vmatpush.bf16.msra.mxu0 0
        %525 = vmatpush.bf16.msra.mxu0 %v472
        %526 = vmatpush.bf16.msra.mxu0 %v466
        %527 = vmatmul.bf16.gmra.mxu0 %v514
        %v528 = vpop.f32.mrf.mxu0
        %v529 = vadd.f32 %v485, %v528
        %v530 = vpop.f32.mrf.mxu0
        %v531 = vadd.f32 %v490, %v530
        %532 = vmatmul.bf16.gmra.mxu0 %v517
        %v533 = vpop.f32.mrf.mxu0
        %v534 = vadd.f32 %v495, %v533
        %v535 = vpop.f32.mrf.mxu0
        %v536 = vadd.f32 %v500, %v535
        %537 = vdwg.mxu0
        %v538 = vmax.f32 %v529, 0.0
        %v539 = vmax.f32 %v531, 0.0
        %v540 = vmax.f32 %v534, 0.0
        %v541 = vmax.f32 %v536, 0.0
        %v542 = vld [vmem:[%s3 + $0x10] sm:$0xf]
        %v543 = vld [vmem:[%s3 + $0x14] sm:$0xf]
        %v544 = vld [vmem:[%s4 + $0x20] sm:$0xff]
        %v545 = vld [vmem:[%s4 + $0x28] sm:$0xff]
        %v546 = vpack.c.bf16 %v539, %v538
        %v547 = vpack.c.bf16 %v541, %v540
        %549 = vset.pattern.permute.xlu0 0
        %550 = vperm.xlu0 %549, %v544
        %v551 = vpop.permute.xlu0 %550
        %554 = vset.pattern.permute.xlu0 0
        %555 = vperm.xlu0 %554, %v545
        %v556 = vpop.permute.xlu0 %555
        %v560 = vunpack.c.l.b16 %v542
        %v561 = vunpack.c.l.b16 %v543
        %v562 = vpack.c.b16 %v561, %v560
        %v564 = vsel %vm512, %v562, 0
        %566 = vmatpush.bf16.msra.mxu0 0
        %567 = vmatpush.bf16.msra.mxu0 0
        %568 = vmatpush.bf16.msra.mxu0 0
        %569 = vmatpush.bf16.msra.mxu0 0
        %570 = vmatpush.bf16.msra.mxu0 0
        %571 = vmatpush.bf16.msra.mxu0 0
        %572 = vmatpush.bf16.msra.mxu0 %v547
        %573 = vmatpush.bf16.msra.mxu0 %v546
        %574 = vmatmul.bf16.gmra.mxu0 %v564
        %v575 = vpop.f32.mrf.mxu0
        %v576 = vadd.f32 %v551, %v575
        %v577 = vpop.f32.mrf.mxu0
        %v578 = vadd.f32 %v556, %v577
        %579 = vdwg.mxu0
        %v580 = vmax.f32 %v576, 0.0
        %v581 = vmax.f32 %v578, 0.0
        %v582 = vld [vmem:[%s4 + $0x30] sm:$0xff]
        %v583 = vld [vmem:[%s4 + $0x38] sm:$0xff]
        %v584 = vld [vmem:[%s4 + $0x40] sm:$0xff]
        %v585 = vld [vmem:[%s4 + $0x48] sm:$0xff]
        %v586 = vld [vmem:[%s4 + $0x50] sm:$0xff]
        %v587 = vld [vmem:[%s4 + $0x58] sm:$0xff]
        %v588 = vld [vmem:[%s4 + $0x60] sm:$0x1]
        %590 = vset.pattern.permute.xlu0 0
        %591 = vperm.xlu0 %590, %v582
        %v592 = vpop.permute.xlu0 %591
        %595 = vset.pattern.permute.xlu0 0
        %596 = vperm.xlu0 %595, %v583
        %v597 = vpop.permute.xlu0 %596
        %v599 = vmul.f32 %v580, %v592
        %v600 = vmul.f32 %v581, %v597
        %v601 = vadd.f32 %v599, %v600
        %v602 = vrot.slane %v601, 4
        %v603 = vadd.f32 %v601, %v602
        %v604 = vrot.slane %v603, 2
        %v605 = vadd.f32 %v603, %v604
        %v606 = vrot.slane %v605, 1
        %v607 = vadd.f32 %v605, %v606
        %609 = vset.pattern.permute.xlu0 0
        %610 = vperm.xlu0 %609, %v584
        %v611 = vpop.permute.xlu0 %610
        %614 = vset.pattern.permute.xlu0 0
        %615 = vperm.xlu0 %614, %v585
        %v616 = vpop.permute.xlu0 %615
        %619 = vset.pattern.permute.xlu0 0
        %620 = vperm.xlu0 %619, %v586
        %v621 = vpop.permute.xlu0 %620
        %624 = vset.pattern.permute.xlu0 0
        %625 = vperm.xlu0 %624, %v587
        %v626 = vpop.permute.xlu0 %625
        %v628 = vmul.f32 %v538, %v611
        %v629 = vmul.f32 %v539, %v616
        %v630 = vmul.f32 %v540, %v621
        %v631 = vmul.f32 %v541, %v626
        %v632 = vadd.f32 %v628, %v629
        %v633 = vadd.f32 %v632, %v630
        %v634 = vadd.f32 %v633, %v631
        %v635 = vrot.slane %v634, 4
        %v636 = vadd.f32 %v634, %v635
        %v637 = vrot.slane %v636, 2
        %v638 = vadd.f32 %v636, %v637
        %v639 = vrot.slane %v638, 1
        %v640 = vadd.f32 %v638, %v639
        %v641 = vadd.f32 %v607, %v640
        %643 = vset.pattern.permute.xlu0 0
        %644 = vperm.xlu0 %643, %v588
        %v645 = vpop.permute.xlu0 %644
        %v647 = vadd.f32 %v641, %v645
        %648 = vst [vmem:[%s281] sm:$0x1] %v647
        %s649 = sand.u32 %s142, 1
        %s650 = scalar_lea.sflag [#allocation4], %s649
        %s651 = sand.u32 %s142, 1
        %s652 = scalar_lea.vmem [#allocation3], %s651
        // Predicated region
        $region82: #{tpu_custom_call.1} parent=76 // pred_check
          %p653 = pneg %p152
        $region83: #{tpu_custom_call.1} parent=76 // pred_check_branch
          %655 = sbr.rel (%p653) target = $region85
        $region84: #{tpu_custom_call.1} parent=76 // pred_region
          %657 = vsyncadd %s650, 0
          %s658 = scalar_lea.hbm %s5, %s19
          %s660 = sshll.u32 %s652, 4
          %s661 = int_to_ptr.vmem [resolvable:$true] %s660
          %s662 = sshll.u32 %s658, 4
          %s663 = int_to_ptr.hbm [resolvable:$true] %s662
          %665 = dma.vmem_to_hbm [thread:$0]  %s661, 16, %s663, %s650
        $region85: #{tpu_custom_call.1} parent=76 // pred_fallthru
          _
      $region77: #{tpu_custom_call.1} parent=5 // pred_fallthru
        _
      %p666 = scmp.le.s32.totalorder 2, %s14
      // Predicated region
      $region86: #{tpu_custom_call.1} parent=5 // pred_check
        %p667 = pneg %p666
      $region87: #{tpu_custom_call.1} parent=5 // pred_check_branch
        %669 = sbr.rel (%p667) target = $region89
      $region88: #{tpu_custom_call.1} parent=5 // pred_region
        %s670 = ssub.s32 %s14, 2
        // Predicated region
        $region90: #{tpu_custom_call.1} parent=88 // pred_check
          %p671 = pneg %p158
        $region91: #{tpu_custom_call.1} parent=88 // pred_check_branch
          %673 = sbr.rel (%p671) target = $region93
        $region92: #{tpu_custom_call.1} parent=88 // pred_region
          %s674 = sand.u32 %s143, 1
          %s675 = scalar_lea.sflag [#allocation4], %s674
          %s676 = sand.u32 %s143, 1
          %s677 = scalar_lea.vmem [#allocation3], %s676
          %679 = dma.done %s675, 16
        $region93: #{tpu_custom_call.1} parent=88 // pred_fallthru
          _
      $region89: #{tpu_custom_call.1} parent=5 // pred_fallthru
        _
    $region6: #{tpu_custom_call.1} parent=1 // loop_footer
      %s18 = sadd.s32 1, %s14
    $region7: #{tpu_custom_call.1} parent=1 // loop_footer_branch
      %13 = sbr.rel target = $region3
    $region8: #{tpu_custom_call.1} parent=1 // loop_exit
      _
    %680 = vsyncpa [#allocation4], 1
    %s681 = scalar_lea.sflag [#allocation4], 1
    %682 = vsyncpa %s681, 1

</llo_original>
